<compile_context>
chip_gen: v7x
topology: tpu7x:2x2x1
jax: 0.10.0
libtpu: 0.0.40
codegen_flags: <defaults>
</compile_context>

<pallas_src>
import math

import jax
import jax.numpy as jnp
from jax.experimental import pallas as pl
from jax.experimental.pallas import tpu as pltpu


def _round_up(a, b):
    return (a + b - 1) // b * b


def _cdiv(a, b):
    return (a + b - 1) // b


def _num_tensorcores():
    """Best-effort TensorCores-per-chip (v7x megacore). Falls back to 1."""
    try:
        info = pltpu.get_tpu_info()
    except Exception:
        return 1
    for name in ("num_cores", "num_tensorcores", "tensorcore_count", "core_count"):
        v = getattr(info, name, None)
        if isinstance(v, int) and v > 0:
            return v
    return 1


def mlm_head_kernel(x_ref, w1_ref, b1_ref, g_ref, be_ref, wd_ref, bd_ref,
                    out_ref, t_ref):
    """grid = (row tiles, vocab tiles); vocab axis is innermost/sequential."""

    @pl.when(pl.program_id(1) == 0)
    def _():
        # dense: x @ W1^T + b1 (torch weight layout is (out, in); contract on
        # the 'in' dim directly so no host transpose is needed).
        h = jax.lax.dot_general(
            x_ref[...], w1_ref[...],
            dimension_numbers=(((1,), (1,)), ((), ())),
            preferred_element_type=jnp.float32)
        h = h + b1_ref[...]
        # exact (erf-based) gelu, matching the PyTorch reference — f32 math.
        h = h * 0.5 * (1.0 + jax.lax.erf(h * (1.0 / math.sqrt(2.0))))
        # BertLayerNorm: mean / biased variance over last dim, eps inside sqrt.
        u = jnp.mean(h, axis=-1, keepdims=True)
        s = jnp.mean((h - u) ** 2, axis=-1, keepdims=True)
        h = (h - u) * jax.lax.rsqrt(s + 1e-12)
        t_ref[...] = (g_ref[...] * h + be_ref[...]).astype(t_ref.dtype)

    # decoder: transformed @ emb_w.T (tile) + bias (tile).
    # emb weight tile is (tv, H): contract on H (MXU consumes a transposed
    # RHS natively).
    # TODO(synk): on v7x an fp8-stored embedding (bf16+fp8 MXU) would halve
    # the dominant V*H HBM stream; kept bf16 here for cross-gen portability.
    scores = jax.lax.dot_general(
        t_ref[...], wd_ref[...],
        dimension_numbers=(((1,), (1,)), ((), ())),
        preferred_element_type=jnp.float32)
    out_ref[...] = (scores + bd_ref[...]).astype(out_ref.dtype)


def prepare_bert_lm_head(dense_w, dense_b, ln_gamma, ln_beta,
                         emb_weights, decoder_bias, *,
                         tv=2048, compute_dtype=jnp.bfloat16):
    """One-time (hoisted) weight preparation: cast to compute dtype and pad
    the vocab dimension to a multiple of the (balanced) vocab tile.

    dense_w: [H, H] torch (out, in) layout; emb_weights: [V, H] tied
    embedding; decoder_bias: [V]. Call this ONCE and reuse the result —
    keeping it in the per-call path would re-stream ~hundreds of MiB of HBM
    per call for a BERT-base vocab.
    """
    V, H = emb_weights.shape
    n_v = max(1, _cdiv(V, tv))
    tv_eff = min(_round_up(V, 128), _round_up(_cdiv(V, n_v), 128))
    V_pad = _round_up(V, tv_eff)

    wd = emb_weights.astype(compute_dtype)                 # (V, H) native layout
    bd = decoder_bias.reshape(1, V).astype(jnp.float32)
    if V_pad != V:
        wd = jnp.pad(wd, ((0, V_pad - V), (0, 0)))
        bd = jnp.pad(bd, ((0, 0), (0, V_pad - V)))

    params = {
        "w1": dense_w.astype(compute_dtype),               # (H_out, H_in), no transpose
        "b1": dense_b.reshape(1, H).astype(jnp.float32),
        "gamma": ln_gamma.reshape(1, H).astype(jnp.float32),
        "beta": ln_beta.reshape(1, H).astype(jnp.float32),
        "wd": wd,                                          # (V_pad, H)
        "bd": bd,                                          # (1, V_pad)
    }
    meta = {"V": V, "V_pad": V_pad, "H": H, "tv": tv_eff,
            "compute_dtype": jnp.dtype(compute_dtype)}
    return params, meta


def bert_lm_prediction_head_apply(x, params, meta, *, tm=512, out_dtype=None,
                                  vmem_budget_bytes=40 * 1024 * 1024):
    """x: [B, S, H]. Returns logits [B, S, V] in `out_dtype` (default x.dtype;
    pass jnp.bfloat16 for the peak-bandwidth path)."""
    B, S, H = x.shape
    assert H == meta["H"], "hidden size mismatch with prepared params"
    V, V_pad = meta["V"], meta["V_pad"]
    cdt = meta["compute_dtype"]
    M = B * S
    out_dtype = jnp.dtype(out_dtype or x.dtype)
    cbytes = jnp.dtype(cdt).itemsize
    obytes = out_dtype.itemsize

    # ---- tile sizing ----------------------------------------------------
    tv_eff = meta["tv"]
    tm_req = max(16, min(tm, _round_up(M, 16)))

    def vmem_usage(tm_, tv_):
        return (2 * tm_ * H * cbytes          # x tiles (double-buffered)
                + 2 * tv_ * H * cbytes        # decoder-weight tiles
                + 2 * tm_ * tv_ * obytes      # output tiles
                + 2 * H * H * cbytes          # dense weight
                + tm_ * H * cbytes            # transform cache scratch
                + 2 * tv_ * 4 + 6 * H * 4)    # decoder bias / LN params

    # Keep the working set under ~40 MiB so the same tiling double-buffers on
    # v7x's 64 MiB/TC VMEM as well as on v5e/v6e (128 MiB).
    # TODO(synk): constant-index operands (w1/b1/gamma/beta) could use
    # pipeline_mode=pl.Buffered(1) to save one buffer each on v7x.
    while vmem_usage(tm_req, tv_eff) > vmem_budget_bytes:
        half_tv = tv_eff // 2
        if half_tv >= 256 and half_tv % 128 == 0 and V_pad % half_tv == 0:
            tv_eff = half_tv
        elif tm_req > 64:
            tm_req = max(64, _round_up(tm_req // 2, 16))
        else:
            break

    # Balanced row tiling: avoid a trailing tile that is almost all padding.
    n_m = max(1, _cdiv(M, tm_req))
    tm_eff = min(_round_up(M, 16), _round_up(_cdiv(M, n_m), 16))
    # Megacore (>=2 TensorCores per chip): guarantee >= 2 row tiles so the
    # "parallel" axis feeds both cores. On 1-TC chips keep a single tile to
    # avoid re-streaming the tied embedding twice.
    if _num_tensorcores() >= 2 and _cdiv(M, tm_eff) < 2 and M >= 32:
        tm_eff = _round_up(_cdiv(M, 2), 16)
    M_pad = _round_up(M, tm_eff)

    grid = (M_pad // tm_eff, V_pad // tv_eff)

    x2 = x.reshape(M, H).astype(cdt)
    if M_pad != M:
        x2 = jnp.pad(x2, ((0, M_pad - M), (0, 0)))

    # Honest memory-traffic estimate: the embedding is re-streamed once per
    # row tile (grid[0] times).
    cost = pl.CostEstimate(
        flops=2 * M_pad * H * (H + V_pad),
        transcendentals=M_pad * H,
        bytes_accessed=(M_pad * H * cbytes                # activations in
                        + H * H * cbytes                  # dense weight
                        + grid[0] * V_pad * H * cbytes    # tied embedding (dominant)
                        + M_pad * V_pad * obytes))        # logits out

    out = pl.pallas_call(
        mlm_head_kernel,
        out_shape=jax.ShapeDtypeStruct((M_pad, V_pad), out_dtype),
        grid_spec=pltpu.PrefetchScalarGridSpec(
            num_scalar_prefetch=0,
            grid=grid,
            in_specs=[
                pl.BlockSpec((tm_eff, H), lambda i, j: (i, 0)),   # x row tile
                pl.BlockSpec((H, H), lambda i, j: (0, 0)),        # dense weight
                pl.BlockSpec((1, H), lambda i, j: (0, 0)),        # dense bias
                pl.BlockSpec((1, H), lambda i, j: (0, 0)),        # LN gamma
                pl.BlockSpec((1, H), lambda i, j: (0, 0)),        # LN beta
                pl.BlockSpec((tv_eff, H), lambda i, j: (j, 0)),   # decoder weight tile
                pl.BlockSpec((1, tv_eff), lambda i, j: (0, j)),   # decoder bias tile
            ],
            out_specs=pl.BlockSpec((tm_eff, tv_eff), lambda i, j: (i, j)),
            # transform cache, reused across the (sequential) vocab axis
            scratch_shapes=[pltpu.VMEM((tm_eff, H), cdt)],
        ),
        compiler_params=pltpu.CompilerParams(
            # Rows are independent -> parallel (megacore). The vocab axis must
            # stay sequential: the scratch is written at j==0 and reused by
            # later vocab tiles of the same row tile.
            dimension_semantics=("parallel", "arbitrary"),
            vmem_limit_bytes=48 * 1024 * 1024),
        cost_estimate=cost,
    )(x2, params["w1"], params["b1"], params["gamma"], params["beta"],
      params["wd"], params["bd"])

    return out[:M, :V].reshape(B, S, V)


def bert_lm_prediction_head(x, dense_w, dense_b, ln_gamma, ln_beta,
                            emb_weights, decoder_bias, *,
                            tm=512, tv=2048,
                            compute_dtype=jnp.bfloat16, out_dtype=None):
    """Convenience one-shot wrapper (prepare + apply). For production, call
    prepare_bert_lm_head once and reuse the prepared params."""
    params, meta = prepare_bert_lm_head(
        dense_w, dense_b, ln_gamma, ln_beta, emb_weights, decoder_bias,
        tv=tv, compute_dtype=compute_dtype)
    return bert_lm_prediction_head_apply(x, params, meta, tm=tm,
                                         out_dtype=out_dtype)


def _reference(x, dense_w, dense_b, ln_gamma, ln_beta, emb_weights, dec_bias):
    h = x @ dense_w.T + dense_b
    h = h * 0.5 * (1.0 + jax.lax.erf(h / math.sqrt(2.0)))
    u = jnp.mean(h, axis=-1, keepdims=True)
    s = jnp.mean((h - u) ** 2, axis=-1, keepdims=True)
    h = (h - u) / jnp.sqrt(s + 1e-12)
    h = ln_gamma * h + ln_beta
    return h @ emb_weights.T + dec_bias


if __name__ == "__main__":
    # Small, BERT-like synthetic config: batch=2, seq=8, hidden=32, vocab=256.
    B, S, H, V = 2, 8, 32, 256

    key = jax.random.PRNGKey(0)
    k_x, k_dw, k_db, k_emb, k_g = jax.random.split(key, 5)

    sequence_output = jax.random.normal(k_x, (B, S, H), jnp.float32)

    dense_w = 0.02 * jax.random.normal(k_dw, (H, H), jnp.float32)       # torch (out,in)
    dense_b = 0.02 * jax.random.normal(k_db, (H,), jnp.float32)
    ln_gamma = 1.0 + 0.01 * jax.random.normal(k_g, (H,), jnp.float32)
    ln_beta = jnp.zeros((H,), jnp.float32)
    emb_weights = 0.02 * jax.random.normal(k_emb, (V, H), jnp.float32)  # tied embedding
    decoder_bias = jnp.zeros((V,), jnp.float32)                         # nn.Parameter(zeros)

    ref = _reference(sequence_output, dense_w, dense_b, ln_gamma, ln_beta,
                     emb_weights, decoder_bias)

    # 1) f32 compute path: near bit-exact against the reference.
    scores_f32 = bert_lm_prediction_head(
        sequence_output, dense_w, dense_b, ln_gamma, ln_beta,
        emb_weights, decoder_bias, compute_dtype=jnp.float32)
    scores_f32 = jax.block_until_ready(scores_f32)
    assert scores_f32.shape == (B, S, V)
    assert jnp.allclose(scores_f32, ref, atol=2e-4, rtol=2e-4)

    # 2) performance path: weights prepared once (hoisted cast/pad), bf16
    #    operands with f32 accumulation, bf16 logits out.
    params, meta = prepare_bert_lm_head(
        dense_w, dense_b, ln_gamma, ln_beta, emb_weights, decoder_bias,
        compute_dtype=jnp.bfloat16)
    scores_bf16 = bert_lm_prediction_head_apply(
        sequence_output, params, meta, out_dtype=jnp.bfloat16)
    scores_bf16 = jax.block_until_ready(scores_bf16)
    assert scores_bf16.shape == (B, S, V)
    assert jnp.allclose(scores_bf16.astype(jnp.float32), ref,
                        atol=2e-2, rtol=2e-2)

    print("KERNEL_OK")
</pallas_src>

<mosaic_0001>
module attributes {stable_mosaic.version = 11 : i64} {
  func.func @mlm_head_kernel(%arg0: i32, %arg1: i32, %arg2: memref<16x32xf32, #tpu.memory_space<vmem>>, %arg3: memref<32x32xf32, #tpu.memory_space<vmem>>, %arg4: memref<1x32xf32, #tpu.memory_space<vmem>>, %arg5: memref<1x32xf32, #tpu.memory_space<vmem>>, %arg6: memref<1x32xf32, #tpu.memory_space<vmem>>, %arg7: memref<256x32xf32, #tpu.memory_space<vmem>>, %arg8: memref<1x256xf32, #tpu.memory_space<vmem>>, %arg9: memref<16x256xf32, #tpu.memory_space<vmem>>, %arg10: memref<16x32xf32, #tpu.memory_space<vmem>>) attributes {dimension_semantics = [#tpu.dimension_semantics<parallel>, #tpu.dimension_semantics<arbitrary>], iteration_bounds = array<i64: 1, 1>, scalar_prefetch = 0 : i64, scratch_operands = 1 : i64, tpu.core_type = #tpu.core_type<tc>, window_params = [{transform_indices = @transform_0, window_bounds = array<i64: 16, 32>}, {pipeline_mode = #tpu.pipeline_mode<synchronous>, transform_indices = @transform_1, window_bounds = array<i64: 32, 32>}, {pipeline_mode = #tpu.pipeline_mode<synchronous>, transform_indices = @transform_2, window_bounds = array<i64: 1, 32>}, {pipeline_mode = #tpu.pipeline_mode<synchronous>, transform_indices = @transform_3, window_bounds = array<i64: 1, 32>}, {pipeline_mode = #tpu.pipeline_mode<synchronous>, transform_indices = @transform_4, window_bounds = array<i64: 1, 32>}, {transform_indices = @transform_5, window_bounds = array<i64: 256, 32>}, {transform_indices = @transform_6, window_bounds = array<i64: 1, 256>}, {transform_indices = @transform_7, window_bounds = array<i64: 16, 256>}]} {
    %c0_i32 = arith.constant 0 : i32
    %0 = arith.cmpi eq, %arg1, %c0_i32 : i32
    %1 = arith.extui %0 : i1 to i32
    %c0_i32_0 = arith.constant 0 : i32
    %2 = arith.cmpi ne, %1, %c0_i32_0 : i32
    scf.if %2 {
      %c0_8 = arith.constant 0 : index
      %c0_9 = arith.constant 0 : index
      %10 = vector.load %arg2[%c0_8, %c0_9] : memref<16x32xf32, #tpu.memory_space<vmem>>, vector<16x32xf32>
      %c0_10 = arith.constant 0 : index
      %c0_11 = arith.constant 0 : index
      %11 = vector.load %arg3[%c0_10, %c0_11] : memref<32x32xf32, #tpu.memory_space<vmem>>, vector<32x32xf32>
      %cst_12 = arith.constant dense<0.000000e+00> : vector<16x32xf32>
      %12 = tpu.matmul %10, %11, %cst_12 {dimension_numbers = #tpu.dot_dimension_numbers<[1], [1], [0], [0], [0, 0, 1, 0], [], []>} : vector<16x32xf32>, vector<32x32xf32>, vector<16x32xf32> -> vector<16x32xf32>
      %c0_13 = arith.constant 0 : index
      %c0_14 = arith.constant 0 : index
      %13 = vector.load %arg4[%c0_13, %c0_14] : memref<1x32xf32, #tpu.memory_space<vmem>>, vector<1x32xf32>
      %14 = vector.broadcast %13 : vector<1x32xf32> to vector<16x32xf32>
      %15 = arith.addf %12, %14 : vector<16x32xf32>
      %cst_15 = arith.constant 5.000000e-01 : f32
      %16 = vector.broadcast %cst_15 : f32 to vector<16x32xf32>
      %17 = arith.mulf %15, %16 : vector<16x32xf32>
      %cst_16 = arith.constant 0.707106769 : f32
      %18 = vector.broadcast %cst_16 : f32 to vector<16x32xf32>
      %19 = arith.mulf %15, %18 : vector<16x32xf32>
      %20 = math.erf %19 : vector<16x32xf32>
      %cst_17 = arith.constant 1.000000e+00 : f32
      %21 = vector.broadcast %cst_17 : f32 to vector<16x32xf32>
      %22 = arith.addf %21, %20 : vector<16x32xf32>
      %23 = arith.mulf %17, %22 : vector<16x32xf32>
      %cst_18 = arith.constant dense<0.000000e+00> : vector<16xf32>
      %24 = vector.multi_reduction <add>, %23, %cst_18 [1] : vector<16x32xf32> to vector<16xf32>
      %25 = vector.shape_cast %24 : vector<16xf32> to vector<16x1xf32>
      %cst_19 = arith.constant 3.200000e+01 : f32
      %26 = vector.broadcast %cst_19 : f32 to vector<16x1xf32>
      %27 = arith.divf %25, %26 : vector<16x1xf32>
      %28 = vector.broadcast %27 : vector<16x1xf32> to vector<16x32xf32>
      %29 = arith.subf %23, %28 : vector<16x32xf32>
      %30 = arith.mulf %29, %29 : vector<16x32xf32>
      %cst_20 = arith.constant dense<0.000000e+00> : vector<16xf32>
      %31 = vector.multi_reduction <add>, %30, %cst_20 [1] : vector<16x32xf32> to vector<16xf32>
      %32 = vector.shape_cast %31 : vector<16xf32> to vector<16x1xf32>
      %cst_21 = arith.constant 3.200000e+01 : f32
      %33 = vector.broadcast %cst_21 : f32 to vector<16x1xf32>
      %34 = arith.divf %32, %33 : vector<16x1xf32>
      %35 = vector.broadcast %27 : vector<16x1xf32> to vector<16x32xf32>
      %36 = arith.subf %23, %35 : vector<16x32xf32>
      %cst_22 = arith.constant 9.99999996E-13 : f32
      %37 = vector.broadcast %cst_22 : f32 to vector<16x1xf32>
      %38 = arith.addf %34, %37 : vector<16x1xf32>
      %39 = math.rsqrt %38 : vector<16x1xf32>
      %40 = vector.broadcast %39 : vector<16x1xf32> to vector<16x32xf32>
      %41 = arith.mulf %36, %40 : vector<16x32xf32>
      %c0_23 = arith.constant 0 : index
      %c0_24 = arith.constant 0 : index
      %42 = vector.load %arg5[%c0_23, %c0_24] : memref<1x32xf32, #tpu.memory_space<vmem>>, vector<1x32xf32>
      %43 = vector.broadcast %42 : vector<1x32xf32> to vector<16x32xf32>
      %44 = arith.mulf %43, %41 : vector<16x32xf32>
      %c0_25 = arith.constant 0 : index
      %c0_26 = arith.constant 0 : index
      %45 = vector.load %arg6[%c0_25, %c0_26] : memref<1x32xf32, #tpu.memory_space<vmem>>, vector<1x32xf32>
      %46 = vector.broadcast %45 : vector<1x32xf32> to vector<16x32xf32>
      %47 = arith.addf %44, %46 : vector<16x32xf32>
      %c0_27 = arith.constant 0 : index
      %c0_28 = arith.constant 0 : index
      %48 = vector.load %arg10[%c0_27, %c0_28] : memref<16x32xf32, #tpu.memory_space<vmem>>, vector<16x32xf32>
      tpu.vector_store %arg10[%c0_27, %c0_28], %47 {strides = array<i32>} : memref<16x32xf32, #tpu.memory_space<vmem>>, vector<16x32xf32>,
    } else {
    }
    %c0 = arith.constant 0 : index
    %c0_1 = arith.constant 0 : index
    %3 = vector.load %arg10[%c0, %c0_1] : memref<16x32xf32, #tpu.memory_space<vmem>>, vector<16x32xf32>
    %c0_2 = arith.constant 0 : index
    %c0_3 = arith.constant 0 : index
    %4 = vector.load %arg7[%c0_2, %c0_3] : memref<256x32xf32, #tpu.memory_space<vmem>>, vector<256x32xf32>
    %cst = arith.constant dense<0.000000e+00> : vector<16x256xf32>
    %5 = tpu.matmul %3, %4, %cst {dimension_numbers = #tpu.dot_dimension_numbers<[1], [1], [0], [0], [0, 0, 1, 0], [], []>} : vector<16x32xf32>, vector<256x32xf32>, vector<16x256xf32> -> vector<16x256xf32>
    %c0_4 = arith.constant 0 : index
    %c0_5 = arith.constant 0 : index
    %6 = vector.load %arg8[%c0_4, %c0_5] : memref<1x256xf32, #tpu.memory_space<vmem>>, vector<1x256xf32>
    %7 = vector.broadcast %6 : vector<1x256xf32> to vector<16x256xf32>
    %8 = arith.addf %5, %7 : vector<16x256xf32>
    %c0_6 = arith.constant 0 : index
    %c0_7 = arith.constant 0 : index
    %9 = vector.load %arg9[%c0_6, %c0_7] : memref<16x256xf32, #tpu.memory_space<vmem>>, vector<16x256xf32>
    tpu.vector_store %arg9[%c0_6, %c0_7], %8 {strides = array<i32>} : memref<16x256xf32, #tpu.memory_space<vmem>>, vector<16x256xf32>,
    return
  }
  func.func @transform_0(%arg0: i32, %arg1: i32) -> (i32, i32) {
    %c0_i32 = arith.constant 0 : i32
    %c0_i32_0 = arith.constant 0 : i32
    return %arg0, %c0_i32 : i32, i32
  }
  func.func @transform_1(%arg0: i32, %arg1: i32) -> (i32, i32) {
    %c0_i32 = arith.constant 0 : i32
    %c0_i32_0 = arith.constant 0 : i32
    %c0_i32_1 = arith.constant 0 : i32
    return %c0_i32, %c0_i32_0 : i32, i32
  }
  func.func @transform_2(%arg0: i32, %arg1: i32) -> (i32, i32) {
    %c0_i32 = arith.constant 0 : i32
    %c0_i32_0 = arith.constant 0 : i32
    %c0_i32_1 = arith.constant 0 : i32
    return %c0_i32, %c0_i32_0 : i32, i32
  }
  func.func @transform_3(%arg0: i32, %arg1: i32) -> (i32, i32) {
    %c0_i32 = arith.constant 0 : i32
    %c0_i32_0 = arith.constant 0 : i32
    %c0_i32_1 = arith.constant 0 : i32
    return %c0_i32, %c0_i32_0 : i32, i32
  }
  func.func @transform_4(%arg0: i32, %arg1: i32) -> (i32, i32) {
    %c0_i32 = arith.constant 0 : i32
    %c0_i32_0 = arith.constant 0 : i32
    %c0_i32_1 = arith.constant 0 : i32
    return %c0_i32, %c0_i32_0 : i32, i32
  }
  func.func @transform_5(%arg0: i32, %arg1: i32) -> (i32, i32) {
    %c0_i32 = arith.constant 0 : i32
    %c0_i32_0 = arith.constant 0 : i32
    return %arg1, %c0_i32 : i32, i32
  }
  func.func @transform_6(%arg0: i32, %arg1: i32) -> (i32, i32) {
    %c0_i32 = arith.constant 0 : i32
    %c0_i32_0 = arith.constant 0 : i32
    return %c0_i32, %arg1 : i32, i32
  }
  func.func @transform_7(%arg0: i32, %arg1: i32) -> (i32, i32) {
    %c0_i32 = arith.constant 0 : i32
    return %arg0, %arg1 : i32, i32
  }
}

</mosaic_0001>

<llo_original>
// kernel: tpu_custom_call.1
$region0: #{tpu_custom_call.1}
  #allocation0 [shape = 'u32[]', space=smem, size = 0x4, offset = 0x4, fixed_abs, tag = 'smem constant byte address 0x4 - core index']
  #allocation1 [shape = 'u32[144,128]{1,0:T(1,128)}', space=vmem, size = 0x12000, scoped, tag = 'internal scratch']
  #allocation2 [shape = 'f32[16,32]{1,0:T(8,128)}', space=vmem, size = 0x2000, scoped, tag = 'scratch operand']
  %s0 = inlined_call_operand.vmem [shape: f32[16,32], index: 0, kind: input, shape index: {}]
  %s1 = inlined_call_operand.vmem [shape: f32[32,32], index: 1, kind: input, shape index: {}]
  %s2 = inlined_call_operand.vmem [shape: f32[1,32], index: 2, kind: input, shape index: {}]
  %s3 = inlined_call_operand.vmem [shape: f32[1,32], index: 3, kind: input, shape index: {}]
  %s4 = inlined_call_operand.vmem [shape: f32[1,32], index: 4, kind: input, shape index: {}]
  %s5 = inlined_call_operand.vmem [shape: f32[256,32], index: 5, kind: input, shape index: {}]
  %s6 = inlined_call_operand.vmem [shape: f32[1,256], index: 6, kind: input, shape index: {}]
  %s7 = inlined_call_operand.hbm [shape: f32[16,256], index: 7, kind: output, shape index: {}]
  %s8 = sld [smem:[#allocation0]]
  $region42: #{tpu_custom_call.1} parent=0
    _
  %s10 = ssub.s32 1, %s8
  %s11 = scalar_select 0, %s10, %s8
  $region1: #{tpu_custom_call.1} parent=0
    #allocation3 [shape = 'u8[16384]{0}', space=vmem, size = 0x4000, scoped, tag = 'output window, operand 0, single buffered']
    #allocation4 [shape = 's32[1]{0}', space=sflag, size = 0x4, scoped, tag = 'scoped memory for tpu_custom_call.1']
    %12 = vsyncpa [#allocation4], 0
    // Predicated region
    $region2: #{tpu_custom_call.1} parent=1 // pred_check
      _
    $region3: #{tpu_custom_call.1} parent=1 // pred_check_branch
      %14 = sbr.rel (0) target = $region5
    $region4: #{tpu_custom_call.1} parent=1 // pred_region
      _
    $region5: #{tpu_custom_call.1} parent=1 // pred_fallthru
      _
    // Predicated region
    $region6: #{tpu_custom_call.1} parent=1 // pred_check
      _
    $region7: #{tpu_custom_call.1} parent=1 // pred_check_branch
      %16 = sbr.rel (0) target = $region9
    $region8: #{tpu_custom_call.1} parent=1 // pred_region
      _
    $region9: #{tpu_custom_call.1} parent=1 // pred_fallthru
      _
    // Predicated region
    $region10: #{tpu_custom_call.1} parent=1 // pred_check
      _
    $region11: #{tpu_custom_call.1} parent=1 // pred_check_branch
      %18 = sbr.rel (0) target = $region13
    $region12: #{tpu_custom_call.1} parent=1 // pred_region
      _
    $region13: #{tpu_custom_call.1} parent=1 // pred_fallthru
      _
    // Predicated region
    $region14: #{tpu_custom_call.1} parent=1 // pred_check
      _
    $region15: #{tpu_custom_call.1} parent=1 // pred_check_branch
      %20 = sbr.rel (0) target = $region17
    $region16: #{tpu_custom_call.1} parent=1 // pred_region
      _
    $region17: #{tpu_custom_call.1} parent=1 // pred_fallthru
      _
    // Predicated region
    $region18: #{tpu_custom_call.1} parent=1 // pred_check
      _
    $region19: #{tpu_custom_call.1} parent=1 // pred_check_branch
      %22 = sbr.rel (0) target = $region21
    $region20: #{tpu_custom_call.1} parent=1 // pred_region
      _
    $region21: #{tpu_custom_call.1} parent=1 // pred_fallthru
      _
    // Predicated region
    $region22: #{tpu_custom_call.1} parent=1 // pred_check
      _
    $region23: #{tpu_custom_call.1} parent=1 // pred_check_branch
      %24 = sbr.rel (0) target = $region25
    $region24: #{tpu_custom_call.1} parent=1 // pred_region
      _
    $region25: #{tpu_custom_call.1} parent=1 // pred_fallthru
      _
    // Predicated region
    $region26: #{tpu_custom_call.1} parent=1 // pred_check
      _
    $region27: #{tpu_custom_call.1} parent=1 // pred_check_branch
      %26 = sbr.rel (0) target = $region29
    $region28: #{tpu_custom_call.1} parent=1 // pred_region
      _
    $region29: #{tpu_custom_call.1} parent=1 // pred_fallthru
      _
    %p27 = scmp.eq.s32.totalorder 0, 0
    // Predicated region
    $region30: #{tpu_custom_call.1} parent=1 // pred_check
      %p28 = pneg %p27
    $region31: #{tpu_custom_call.1} parent=1 // pred_check_branch
      %30 = sbr.rel (%p28) target = $region33
    $region32: #{tpu_custom_call.1} parent=1 // pred_region
      %v31 = vld [vmem:[%s0] sm:$0xff]
      %v32 = vld [vmem:[%s0 + $0x8] sm:$0xff]
      %v33 = vld [vmem:[%s1] sm:$0xff]
      %v34 = vld [vmem:[%s1 + $0x8] sm:$0xff]
      %v35 = vld [vmem:[%s1 + $0x10] sm:$0xff]
      %v36 = vld [vmem:[%s1 + $0x18] sm:$0xff]
      %v37 = vld [vmem:[%s2] sm:$0x1]
      %v39 = vlaneseq
      %v40 = vshrl.u32 %v39, 7
      %v41 = vsub.s32 0, %v40
      %v42 = vrot.slane %v37, %v41
      %vm44 = vcmask 261120
      %v46 = vsel %vm44, %v31, 0
      %v49 = vsel %vm44, %v32, 0
      %v52 = vsel %vm44, %v33, 0
      %v55 = vsel %vm44, %v34, 0
      %v58 = vsel %vm44, %v35, 0
      %v61 = vsel %vm44, %v36, 0
      %63 = vmatprep.subr.mxu0 0.0
      %64 = vmatpush1.xpose.msra.mxu0 %v52
      %65 = vmatprep.subr.mxu0 0.0
      %66 = vmatpush1.xpose.msra.mxu0 %v55
      %67 = vmatprep.subr.mxu0 0.0
      %68 = vmatpush1.xpose.msra.mxu0 %v58
      %69 = vmatprep.subr.mxu0 0.0
      %70 = vmatpush1.xpose.msra.mxu0 %v61
      %71 = vmatprep.subr.mxu0 0.0
      %72 = vmatpush1.xpose.msra.mxu0 0.0
      %73 = vmatprep.subr.mxu0 0.0
      %74 = vmatpush1.xpose.msra.mxu0 0.0
      %75 = vmatprep.subr.mxu0 0.0
      %76 = vmatpush1.xpose.msra.mxu0 0.0
      %77 = vmatprep.subr.mxu0 0.0
      %78 = vmatpush1.xpose.msra.mxu0 0.0
      %79 = vmatprep.subr.mxu0 0.0
      %80 = vmatpush1.xpose.msra.mxu0 0.0
      %81 = vmatprep.subr.mxu0 0.0
      %82 = vmatpush1.xpose.msra.mxu0 0.0
      %83 = vmatprep.subr.mxu0 0.0
      %84 = vmatpush1.xpose.msra.mxu0 0.0
      %85 = vmatprep.subr.mxu0 0.0
      %86 = vmatpush1.xpose.msra.mxu0 0.0
      %87 = vmatprep.subr.mxu0 0.0
      %88 = vmatpush1.xpose.msra.mxu0 0.0
      %89 = vmatprep.subr.mxu0 0.0
      %90 = vmatpush1.xpose.msra.mxu0 0.0
      %91 = vmatprep.subr.mxu0 0.0
      %92 = vmatpush1.xpose.msra.mxu0 0.0
      %93 = vmatprep.subr.mxu0 0.0
      %94 = vmatpush1.xpose.msra.mxu0 0.0
      %95 = vmatprep.subr.mxu0 0.0
      %96 = vmatpush1.xpose.msra.mxu0 0.0
      %97 = vmatprep.subr.mxu0 0.0
      %98 = vmatpush1.xpose.msra.mxu0 0.0
      %99 = vmatprep.subr.mxu0 0.0
      %100 = vmatpush1.xpose.msra.mxu0 0.0
      %101 = vmatprep.subr.mxu0 0.0
      %102 = vmatpush1.xpose.msra.mxu0 0.0
      %103 = vmatprep.subr.mxu0 0.0
      %104 = vmatpush1.xpose.msra.mxu0 0.0
      %105 = vmatprep.subr.mxu0 0.0
      %106 = vmatpush1.xpose.msra.mxu0 0.0
      %107 = vmatprep.subr.mxu0 0.0
      %108 = vmatpush1.xpose.msra.mxu0 0.0
      %109 = vmatprep.subr.mxu0 0.0
      %110 = vmatpush1.xpose.msra.mxu0 0.0
      %111 = vmatprep.subr.mxu0 0.0
      %112 = vmatpush1.xpose.msra.mxu0 0.0
      %113 = vmatprep.subr.mxu0 0.0
      %114 = vmatpush1.xpose.msra.mxu0 0.0
      %115 = vmatprep.subr.mxu0 0.0
      %116 = vmatpush1.xpose.msra.mxu0 0.0
      %117 = vmatprep.subr.mxu0 0.0
      %118 = vmatpush1.xpose.msra.mxu0 0.0
      %119 = vmatprep.subr.mxu0 0.0
      %120 = vmatpush1.xpose.msra.mxu0 0.0
      %121 = vmatprep.subr.mxu0 0.0
      %122 = vmatpush1.xpose.msra.mxu0 0.0
      %123 = vmatprep.subr.mxu0 0.0
      %124 = vmatpush1.xpose.msra.mxu0 0.0
      %125 = vmatprep.subr.mxu0 0.0
      %126 = vmatpush1.xpose.msra.mxu0 0.0
      %127 = vmatprep.mubr.f32.mxu0 0.0
      %128 = vmatmul.mubr.f32.gmra.mrb[0].mxu0 %v46
      %v129 = vpop.f32.mrb[0].mxu0
      %v130 = vadd.f32 %v42, %v129
      %v131 = vpop.f32.mrb[0].mxu0
      %132 = vmatprep.mubr.f32.mxu0 0.0
      %133 = vmatmul.mubr.f32.gmra.mrb[0].mxu0 %v49
      %v134 = vpop.f32.mrb[0].mxu0
      %v135 = vadd.f32 %v42, %v134
      %v136 = vpop.f32.mrb[0].mxu0
      %137 = vdwg.mxu0
      %v138 = vmul.f32 %v130, 0.5
      %v139 = vmul.f32 %v135, 0.5
      %v140 = vmul.f32 %v130, 0.70710677
      %v141 = vmul.f32 %v135, 0.70710677
      %v142 = verf.f32.pop %v140
      %v143 = verf.f32.pop %v141
      %v144 = vadd.f32 %v142, 1.0
      %v145 = vadd.f32 %v143, 1.0
      %v146 = vmul.f32 %v138, %v144
      %v147 = vmul.f32 %v139, %v145
      %v148 = vsel %vm44, %v146, 0.0
      %149 = vadd.xlane.f32.xlu0 %v148
      %v150 = vpop.xlane.xlu0 %149
      %v151 = vsel %vm44, %v147, 0.0
      %152 = vadd.xlane.f32.xlu0 %v151
      %v153 = vpop.xlane.xlu0 %152
      %v154 = vrcp.pop 32.0
      %v155 = vmul.f32 %v150, %v154
      %v156 = vmul.f32 %v153, %v154
      %v157 = vsub.f32 %v146, %v155
      %v158 = vsub.f32 %v147, %v156
      %v159 = vmul.f32 %v157, %v157
      %v160 = vmul.f32 %v158, %v158
      %v161 = vsel %vm44, %v159, 0.0
      %162 = vadd.xlane.f32.xlu0 %v161
      %v163 = vpop.xlane.xlu0 %162
      %v164 = vsel %vm44, %v160, 0.0
      %165 = vadd.xlane.f32.xlu0 %v164
      %v166 = vpop.xlane.xlu0 %165
      %v167 = vmul.f32 %v163, %v154
      %v168 = vmul.f32 %v166, %v154
      %v169 = vadd.f32 %v167, 1e-12
      %v170 = vadd.f32 %v168, 1e-12
      %v171 = vrsqrt.pop %v169
      %v172 = vrsqrt.pop %v170
      %v173 = vmul.f32 %v157, %v171
      %v174 = vmul.f32 %v158, %v172
      %v175 = vld [vmem:[%s3] sm:$0x1]
      %v177 = vlaneseq
      %v178 = vshrl.u32 %v177, 7
      %v179 = vsub.s32 0, %v178
      %v180 = vrot.slane %v175, %v179
      %v182 = vmul.f32 %v180, %v173
      %v183 = vmul.f32 %v180, %v174
      %v184 = vld [vmem:[%s4] sm:$0x1]
      %v186 = vlaneseq
      %v187 = vshrl.u32 %v186, 7
      %v188 = vsub.s32 0, %v187
      %v189 = vrot.slane %v184, %v188
      %v191 = vadd.f32 %v182, %v189
      %v192 = vadd.f32 %v183, %v189
      %193 = vst.msk [vmem:[#allocation2] sm:$0xff] %vm44, %v191
      %194 = vst.msk [vmem:[#allocation2 + $0x8] sm:$0xff] %vm44, %v192
    $region33: #{tpu_custom_call.1} parent=1 // pred_fallthru
      _
    %v195 = vld [vmem:[#allocation2] sm:$0xff]
    %v196 = vld [vmem:[#allocation2 + $0x8] sm:$0xff]
    %v197 = vld [vmem:[%s5] sm:$0xff]
    %v198 = vld [vmem:[%s5 + $0x8] sm:$0xff]
    %v199 = vld [vmem:[%s5 + $0x10] sm:$0xff]
    %v200 = vld [vmem:[%s5 + $0x18] sm:$0xff]
    %v201 = vld [vmem:[%s5 + $0x20] sm:$0xff]
    %v202 = vld [vmem:[%s5 + $0x28] sm:$0xff]
    %v203 = vld [vmem:[%s5 + $0x30] sm:$0xff]
    %v204 = vld [vmem:[%s5 + $0x38] sm:$0xff]
    %v205 = vld [vmem:[%s5 + $0x40] sm:$0xff]
    %v206 = vld [vmem:[%s5 + $0x48] sm:$0xff]
    %v207 = vld [vmem:[%s5 + $0x50] sm:$0xff]
    %v208 = vld [vmem:[%s5 + $0x58] sm:$0xff]
    %v209 = vld [vmem:[%s5 + $0x60] sm:$0xff]
    %v210 = vld [vmem:[%s5 + $0x68] sm:$0xff]
    %v211 = vld [vmem:[%s5 + $0x70] sm:$0xff]
    %v212 = vld [vmem:[%s5 + $0x78] sm:$0xff]
    %v213 = vld [vmem:[%s5 + $0x80] sm:$0xff]
    %v214 = vld [vmem:[%s5 + $0x88] sm:$0xff]
    %v215 = vld [vmem:[%s5 + $0x90] sm:$0xff]
    %v216 = vld [vmem:[%s5 + $0x98] sm:$0xff]
    %v217 = vld [vmem:[%s5 + $0xa0] sm:$0xff]
    %v218 = vld [vmem:[%s5 + $0xa8] sm:$0xff]
    %v219 = vld [vmem:[%s5 + $0xb0] sm:$0xff]
    %v220 = vld [vmem:[%s5 + $0xb8] sm:$0xff]
    %v221 = vld [vmem:[%s5 + $0xc0] sm:$0xff]
    %v222 = vld [vmem:[%s5 + $0xc8] sm:$0xff]
    %v223 = vld [vmem:[%s5 + $0xd0] sm:$0xff]
    %v224 = vld [vmem:[%s5 + $0xd8] sm:$0xff]
    %v225 = vld [vmem:[%s5 + $0xe0] sm:$0xff]
    %v226 = vld [vmem:[%s5 + $0xe8] sm:$0xff]
    %v227 = vld [vmem:[%s5 + $0xf0] sm:$0xff]
    %v228 = vld [vmem:[%s5 + $0xf8] sm:$0xff]
    %v229 = vld [vmem:[%s6] sm:$0x3]
    %v231 = vlaneseq
    %v232 = vshrl.u32 %v231, 7
    %v233 = vsub.s32 0, %v232
    %v234 = vrot.slane %v229, %v233
    %v235 = vlaneseq
    %v236 = vshrl.u32 %v235, 7
    %v237 = vsub.s32 1, %v236
    %v238 = vrot.slane %v229, %v237
    %vm241 = vcmask 261120
    %v243 = vsel %vm241, %v195, 0
    %v246 = vsel %vm241, %v196, 0
    %v249 = vsel %vm241, %v197, 0
    %v252 = vsel %vm241, %v198, 0
    %v255 = vsel %vm241, %v199, 0
    %v258 = vsel %vm241, %v200, 0
    %v261 = vsel %vm241, %v201, 0
    %v264 = vsel %vm241, %v202, 0
    %v267 = vsel %vm241, %v203, 0
    %v270 = vsel %vm241, %v204, 0
    %v273 = vsel %vm241, %v205, 0
    %v276 = vsel %vm241, %v206, 0
    %v279 = vsel %vm241, %v207, 0
    %v282 = vsel %vm241, %v208, 0
    %v285 = vsel %vm241, %v209, 0
    %v288 = vsel %vm241, %v210, 0
    %v291 = vsel %vm241, %v211, 0
    %v294 = vsel %vm241, %v212, 0
    %v297 = vsel %vm241, %v213, 0
    %v300 = vsel %vm241, %v214, 0
    %v303 = vsel %vm241, %v215, 0
    %v306 = vsel %vm241, %v216, 0
    %v309 = vsel %vm241, %v217, 0
    %v312 = vsel %vm241, %v218, 0
    %v315 = vsel %vm241, %v219, 0
    %v318 = vsel %vm241, %v220, 0
    %v321 = vsel %vm241, %v221, 0
    %v324 = vsel %vm241, %v222, 0
    %v327 = vsel %vm241, %v223, 0
    %v330 = vsel %vm241, %v224, 0
    %v333 = vsel %vm241, %v225, 0
    %v336 = vsel %vm241, %v226, 0
    %v339 = vsel %vm241, %v227, 0
    %v342 = vsel %vm241, %v228, 0
    %344 = vmatprep.subr.mxu0 0.0
    %345 = vmatpush1.xpose.msra.mxu0 %v249
    %346 = vmatprep.subr.mxu0 0.0
    %347 = vmatpush1.xpose.msra.mxu0 %v252
    %348 = vmatprep.subr.mxu0 0.0
    %349 = vmatpush1.xpose.msra.mxu0 %v255
    %350 = vmatprep.subr.mxu0 0.0
    %351 = vmatpush1.xpose.msra.mxu0 %v258
    %352 = vmatprep.subr.mxu0 0.0
    %353 = vmatpush1.xpose.msra.mxu0 %v261
    %354 = vmatprep.subr.mxu0 0.0
    %355 = vmatpush1.xpose.msra.mxu0 %v264
    %356 = vmatprep.subr.mxu0 0.0
    %357 = vmatpush1.xpose.msra.mxu0 %v267
    %358 = vmatprep.subr.mxu0 0.0
    %359 = vmatpush1.xpose.msra.mxu0 %v270
    %360 = vmatprep.subr.mxu0 0.0
    %361 = vmatpush1.xpose.msra.mxu0 %v273
    %362 = vmatprep.subr.mxu0 0.0
    %363 = vmatpush1.xpose.msra.mxu0 %v276
    %364 = vmatprep.subr.mxu0 0.0
    %365 = vmatpush1.xpose.msra.mxu0 %v279
    %366 = vmatprep.subr.mxu0 0.0
    %367 = vmatpush1.xpose.msra.mxu0 %v282
    %368 = vmatprep.subr.mxu0 0.0
    %369 = vmatpush1.xpose.msra.mxu0 %v285
    %370 = vmatprep.subr.mxu0 0.0
    %371 = vmatpush1.xpose.msra.mxu0 %v288
    %372 = vmatprep.subr.mxu0 0.0
    %373 = vmatpush1.xpose.msra.mxu0 %v291
    %374 = vmatprep.subr.mxu0 0.0
    %375 = vmatpush1.xpose.msra.mxu0 %v294
    %376 = vmatprep.subr.mxu0 0.0
    %377 = vmatpush1.xpose.msra.mxu0 %v297
    %378 = vmatprep.subr.mxu0 0.0
    %379 = vmatpush1.xpose.msra.mxu0 %v300
    %380 = vmatprep.subr.mxu0 0.0
    %381 = vmatpush1.xpose.msra.mxu0 %v303
    %382 = vmatprep.subr.mxu0 0.0
    %383 = vmatpush1.xpose.msra.mxu0 %v306
    %384 = vmatprep.subr.mxu0 0.0
    %385 = vmatpush1.xpose.msra.mxu0 %v309
    %386 = vmatprep.subr.mxu0 0.0
    %387 = vmatpush1.xpose.msra.mxu0 %v312
    %388 = vmatprep.subr.mxu0 0.0
    %389 = vmatpush1.xpose.msra.mxu0 %v315
    %390 = vmatprep.subr.mxu0 0.0
    %391 = vmatpush1.xpose.msra.mxu0 %v318
    %392 = vmatprep.subr.mxu0 0.0
    %393 = vmatpush1.xpose.msra.mxu0 %v321
    %394 = vmatprep.subr.mxu0 0.0
    %395 = vmatpush1.xpose.msra.mxu0 %v324
    %396 = vmatprep.subr.mxu0 0.0
    %397 = vmatpush1.xpose.msra.mxu0 %v327
    %398 = vmatprep.subr.mxu0 0.0
    %399 = vmatpush1.xpose.msra.mxu0 %v330
    %400 = vmatprep.subr.mxu0 0.0
    %401 = vmatpush1.xpose.msra.mxu0 %v333
    %402 = vmatprep.subr.mxu0 0.0
    %403 = vmatpush1.xpose.msra.mxu0 %v336
    %404 = vmatprep.subr.mxu0 0.0
    %405 = vmatpush1.xpose.msra.mxu0 %v339
    %406 = vmatprep.subr.mxu0 0.0
    %407 = vmatpush1.xpose.msra.mxu0 %v342
    %408 = vmatprep.mubr.f32.mxu0 0.0
    %409 = vmatmul.mubr.f32.gmra.mrb[0].mxu0 %v243
    %v410 = vpop.f32.mrb[0].mxu0
    %v411 = vadd.f32 %v234, %v410
    %v412 = vpop.f32.mrb[0].mxu0
    %v413 = vadd.f32 %v238, %v412
    %414 = vmatprep.mubr.f32.mxu0 0.0
    %415 = vmatmul.mubr.f32.gmra.mrb[0].mxu0 %v246
    %v416 = vpop.f32.mrb[0].mxu0
    %v417 = vadd.f32 %v234, %v416
    %v418 = vpop.f32.mrb[0].mxu0
    %v419 = vadd.f32 %v238, %v418
    %420 = vdwg.mxu0
    %421 = vst [vmem:[#allocation3] sm:$0xff] %v411
    %422 = vst [vmem:[#allocation3 + $0x8] sm:$0xff] %v413
    %423 = vst [vmem:[#allocation3 + $0x10] sm:$0xff] %v417
    %424 = vst [vmem:[#allocation3 + $0x18] sm:$0xff] %v419
    // Predicated region
    $region34: #{tpu_custom_call.1} parent=1 // pred_check
      _
    $region35: #{tpu_custom_call.1} parent=1 // pred_check_branch
      %426 = sbr.rel (0) target = $region37
    $region36: #{tpu_custom_call.1} parent=1 // pred_region
      %s428 = ssub.s32 512, 512
      %429 = vsyncadd [#allocation4], %s428
      %s430 = sshll.u32 [#allocation3], 4
      %s431 = int_to_ptr.vmem [resolvable:$true] %s430
      %436 = dma.vmem_to_hbm [thread:$0]  %s431, 512, %s7, [#allocation4], 256, 256, 16
    $region37: #{tpu_custom_call.1} parent=1 // pred_fallthru
      _
    // Predicated region
    $region38: #{tpu_custom_call.1} parent=1 // pred_check
      _
    $region39: #{tpu_custom_call.1} parent=1 // pred_check_branch
      %438 = sbr.rel (0) target = $region41
    $region40: #{tpu_custom_call.1} parent=1 // pred_region
      %439 = dma.done [#allocation4], 512
    $region41: #{tpu_custom_call.1} parent=1 // pred_fallthru
      _
    %440 = vsyncpa [#allocation4], 1

</llo_original>
